<compile_context>
chip_gen: v7x
topology: tpu7x:2x2x1
jax: 0.10.0
libtpu: 0.0.40
codegen_flags: <defaults>
</compile_context>

<pallas_src>
import jax
import jax.numpy as jnp
from jax.experimental import pallas as pl
from jax.experimental.pallas import tpu as pltpu


def _round_up(x, m):
    return (x + m - 1) // m * m


def _tpu_params():
    """(VMEM capacity bytes, TensorCores per chip) with safe fallbacks."""
    vmem_cap = 64 * 1024 * 1024
    try:
        if hasattr(pltpu, "get_tpu_info"):
            info = pltpu.get_tpu_info()
            vmem_cap = int(getattr(info, "vmem_capacity_bytes", vmem_cap))
    except Exception:
        pass
    # v7x: 64 MiB VMEM per TensorCore, 2 TCs/chip; v5e/v6e: 128 MiB, 1 TC.
    num_tc = 2 if vmem_cap <= 80 * 1024 * 1024 else 1
    return vmem_cap, num_tc


def _make_gru_kernel(F, Fp):
    def kernel(i_ref, h_ref, wrzi_ref, wrzh_ref, wni_ref, wnh_ref, b_ref, o_ref):
        i = i_ref[...]
        h = h_ref[...]

        # Fused (1, 4*Fp) bias slab; every slice starts at a 128-aligned lane offset.
        b_rz = b_ref[:, : 2 * Fp]
        b_ni = b_ref[:, 2 * Fp: 2 * Fp + F]
        b_nh = b_ref[:, 3 * Fp: 3 * Fp + F]

        # r/z gates: two MXU dots summed into one f32 result (no in-kernel concat,
        # no tb x (fmap_in+F) VMEM copy per grid step).
        g_rz = (jnp.dot(i, wrzi_ref[...], preferred_element_type=jnp.float32)
                + jnp.dot(h, wrzh_ref[...], preferred_element_type=jnp.float32)
                + b_rz)
        n_i = jnp.dot(i, wni_ref[...], preferred_element_type=jnp.float32) + b_ni
        n_h = jnp.dot(h, wnh_ref[...], preferred_element_type=jnp.float32) + b_nh

        # sigmoid(v) = 0.5 * (1 + tanh(0.5 * v)) -> one transcendental per element.
        rz = 0.5 * (1.0 + jnp.tanh(0.5 * g_rz))
        r = rz[:, :F]             # starts at lane 0
        z = rz[:, Fp: Fp + F]     # starts at a 128-aligned lane

        n = jnp.tanh(n_i + r * n_h)
        hf = h.astype(jnp.float32)
        o_ref[...] = (n + z * (hf - n)).astype(o_ref.dtype)   # == (1-z)*n + z*h

    return kernel


def gru_update(i, h, w_ih, b_ih, w_hh, b_hh, *, tile_b=None,
               vmem_budget_bytes=None, compute_dtype=None):
    """GRU update via Pallas.

    i: (B, fmap_in), h: (B, fmap_out)
    w_ih: (3*fmap_out, fmap_in), b_ih: (3*fmap_out,)   [PyTorch nn.Linear layout]
    w_hh: (3*fmap_out, fmap_out), b_hh: (3*fmap_out,)
    """
    B, fmap_in = i.shape
    Bh, F = h.shape
    assert B == Bh
    assert w_ih.shape == (3 * F, fmap_in) and b_ih.shape == (3 * F,)
    assert w_hh.shape == (3 * F, F) and b_hh.shape == (3 * F,)

    if compute_dtype is not None:   # e.g. jnp.bfloat16 when model accuracy allows
        i = i.astype(compute_dtype)
        h = h.astype(compute_dtype)
        w_ih = w_ih.astype(compute_dtype)
        w_hh = w_hh.astype(compute_dtype)

    Fp = _round_up(F, 128)          # 128-aligned per-gate column slot

    # ---- weight / bias prep (plain JAX glue; hoist if called inside a scan) ----
    wr_i, wz_i, wn_i = w_ih[:F], w_ih[F:2 * F], w_ih[2 * F:]
    wr_h, wz_h, wn_h = w_hh[:F], w_hh[F:2 * F], w_hh[2 * F:]

    def pad_cols(w):                # (K, F) -> (K, Fp), zero-padded gate columns
        return w if Fp == F else jnp.pad(w, ((0, 0), (0, Fp - F)))

    w_rz_i = jnp.concatenate([pad_cols(wr_i.T), pad_cols(wz_i.T)], axis=1)  # (fmap_in, 2Fp)
    w_rz_h = jnp.concatenate([pad_cols(wr_h.T), pad_cols(wz_h.T)], axis=1)  # (F, 2Fp)
    w_ni = wn_i.T                                                           # (fmap_in, F)
    w_nh = wn_h.T                                                           # (F, F)

    def pad_vec(b):                 # (F,) -> (Fp,)
        return b if Fp == F else jnp.pad(b, (0, Fp - F))

    b_all = jnp.concatenate([
        pad_vec((b_ih[:F] + b_hh[:F]).astype(jnp.float32)),             # r (pre-added)
        pad_vec((b_ih[F:2 * F] + b_hh[F:2 * F]).astype(jnp.float32)),   # z (pre-added)
        pad_vec(b_ih[2 * F:].astype(jnp.float32)),                      # n, input side
        pad_vec(b_hh[2 * F:].astype(jnp.float32)),                      # n, hidden side
    ]).reshape(1, 4 * Fp)

    # ---- generation-aware tile / VMEM policy ------------------------------------
    vmem_cap, num_tc = _tpu_params()
    if vmem_budget_bytes is None:
        vmem_budget_bytes = int(0.70 * vmem_cap)    # ~88 MiB v5e/v6e, ~44 MiB v7x

    act_itemsize = jnp.dtype(i.dtype).itemsize
    sub = 8 if act_itemsize >= 4 else (16 if act_itemsize == 2 else 32)
    if tile_b is None:
        tile_b = 512 if act_itemsize >= 4 else 1024

    tb = max(sub, _round_up(min(tile_b, B), sub))
    # Split the batch across TensorCores only on chips that have >1 TC (v7x).
    if num_tc > 1 and B > sub and pl.cdiv(B, tb) < num_tc:
        tb = max(sub, _round_up(pl.cdiv(B, num_tc), sub))

    w_itemsize = jnp.dtype(w_ih.dtype).itemsize

    def vmem_estimate(tb_, buf_io=3):
        acts_in = buf_io * tb_ * (fmap_in + F) * act_itemsize           # streamed i, h
        acts_out = 2 * tb_ * F * jnp.dtype(h.dtype).itemsize            # streamed o
        weights = 2 * ((fmap_in + F) * 2 * Fp + fmap_in * F + F * F) * w_itemsize
        biases = 2 * 4 * Fp * 4
        temps = tb_ * (2 * Fp + 5 * F) * 4                               # f32 intermediates
        return acts_in + acts_out + weights + biases + temps

    while tb > sub and vmem_estimate(tb) > vmem_budget_bytes:
        tb = max(sub, _round_up(tb // 2, sub))

    grid_steps = pl.cdiv(B, tb)               # partial last block; no jnp.pad round trip
    buf_io = 3 if grid_steps >= 3 else 2      # deeper buffering once the pipeline is long

    est = vmem_estimate(tb, buf_io)
    vmem_limit = int(min(0.9 * vmem_cap, max(1.25 * est, float(vmem_budget_bytes))))

    def act_spec(ncols):
        idx = lambda b: (b, 0)
        if buf_io > 2 and hasattr(pl, "Buffered"):
            try:
                return pl.BlockSpec((tb, ncols), idx, pipeline_mode=pl.Buffered(buf_io))
            except TypeError:
                pass
        return pl.BlockSpec((tb, ncols), idx)

    # TODO(synk): for very large F (resident weights approaching half of VMEM, e.g. on
    # v7x) add a second grid dimension over the gate/output (N) axis so the weights are
    # streamed in N-tiles instead of kept fully resident.
    out = pl.pallas_call(
        _make_gru_kernel(F, Fp),
        out_shape=jax.ShapeDtypeStruct((B, F), h.dtype),
        grid_spec=pltpu.PrefetchScalarGridSpec(
            num_scalar_prefetch=0,
            grid=(grid_steps,),
            in_specs=[
                act_spec(fmap_in),                                   # i    (streamed)
                act_spec(F),                                         # h    (streamed)
                pl.BlockSpec((fmap_in, 2 * Fp), lambda b: (0, 0)),   # W_rz input side
                pl.BlockSpec((F, 2 * Fp), lambda b: (0, 0)),         # W_rz hidden side
                pl.BlockSpec((fmap_in, F), lambda b: (0, 0)),        # W_n  input side
                pl.BlockSpec((F, F), lambda b: (0, 0)),              # W_n  hidden side
                pl.BlockSpec((1, 4 * Fp), lambda b: (0, 0)),         # fused biases
            ],
            out_specs=pl.BlockSpec((tb, F), lambda b: (b, 0)),
        ),
        compiler_params=pltpu.CompilerParams(
            dimension_semantics=("parallel",),
            vmem_limit_bytes=vmem_limit),
    )(i, h, w_rz_i, w_rz_h, w_ni, w_nh, b_all)

    return out


def gru_update_ref(i, h, w_ih, b_ih, w_hh, b_hh):
    hp = jax.lax.Precision.HIGHEST
    gi = jnp.dot(i, w_ih.T, precision=hp) + b_ih
    gh = jnp.dot(h, w_hh.T, precision=hp) + b_hh
    F = h.shape[-1]
    r = jax.nn.sigmoid(gi[:, :F] + gh[:, :F])
    z = jax.nn.sigmoid(gi[:, F:2 * F] + gh[:, F:2 * F])
    n = jnp.tanh(gi[:, 2 * F:] + r * gh[:, 2 * F:])
    return (1.0 - z) * n + z * h


if __name__ == "__main__":
    B, fmap_in, fmap_out = 24, 256, 128

    key = jax.random.PRNGKey(0)
    k_i, k_h, k_wih, k_bih, k_whh, k_bhh = jax.random.split(key, 6)

    i = jax.random.normal(k_i, (B, fmap_in), dtype=jnp.float32)
    h = jax.random.normal(k_h, (B, fmap_out), dtype=jnp.float32)

    # Deterministic "nn.Linear"-style init (uniform in +/- 1/sqrt(fan_in)).
    lim_ih = 1.0 / jnp.sqrt(fmap_in)
    lim_hh = 1.0 / jnp.sqrt(fmap_out)
    w_ih = jax.random.uniform(k_wih, (3 * fmap_out, fmap_in), jnp.float32, -lim_ih, lim_ih)
    b_ih = jax.random.uniform(k_bih, (3 * fmap_out,), jnp.float32, -lim_ih, lim_ih)
    w_hh = jax.random.uniform(k_whh, (3 * fmap_out, fmap_out), jnp.float32, -lim_hh, lim_hh)
    b_hh = jax.random.uniform(k_bhh, (3 * fmap_out,), jnp.float32, -lim_hh, lim_hh)

    ref = gru_update_ref(i, h, w_ih, b_ih, w_hh, b_hh)

    # 1) auto tile policy; 2) explicit tile leaving a partial last block (exercises the
    #    no-pad path: out-of-bounds rows are masked, never written back).
    out_a = jax.block_until_ready(gru_update(i, h, w_ih, b_ih, w_hh, b_hh))
    out_b = jax.block_until_ready(gru_update(i, h, w_ih, b_ih, w_hh, b_hh, tile_b=16))

    for out in (out_a, out_b):
        assert out.shape == (B, fmap_out)
        assert jnp.allclose(out, ref, atol=1e-4, rtol=1e-4), \
            float(jnp.max(jnp.abs(out - ref)))

    print("KERNEL_OK")
</pallas_src>

<mosaic_0001>
module attributes {stable_mosaic.version = 11 : i64} {
  func.func @kernel(%arg0: i32, %arg1: memref<16x256xf32, #tpu.memory_space<vmem>>, %arg2: memref<16x128xf32, #tpu.memory_space<vmem>>, %arg3: memref<256x256xf32, #tpu.memory_space<vmem>>, %arg4: memref<128x256xf32, #tpu.memory_space<vmem>>, %arg5: memref<256x128xf32, #tpu.memory_space<vmem>>, %arg6: memref<128x128xf32, #tpu.memory_space<vmem>>, %arg7: memref<1x512xf32, #tpu.memory_space<vmem>>, %arg8: memref<16x128xf32, #tpu.memory_space<vmem>>) attributes {dimension_semantics = [#tpu.dimension_semantics<parallel>], iteration_bounds = array<i64: 2>, scalar_prefetch = 0 : i64, scratch_operands = 0 : i64, tpu.core_type = #tpu.core_type<tc>, window_params = [{transform_indices = @transform_0, window_bounds = array<i64: 16, 256>}, {transform_indices = @transform_1, window_bounds = array<i64: 16, 128>}, {pipeline_mode = #tpu.pipeline_mode<synchronous>, transform_indices = @transform_2, window_bounds = array<i64: 256, 256>}, {pipeline_mode = #tpu.pipeline_mode<synchronous>, transform_indices = @transform_3, window_bounds = array<i64: 128, 256>}, {pipeline_mode = #tpu.pipeline_mode<synchronous>, transform_indices = @transform_4, window_bounds = array<i64: 256, 128>}, {pipeline_mode = #tpu.pipeline_mode<synchronous>, transform_indices = @transform_5, window_bounds = array<i64: 128, 128>}, {pipeline_mode = #tpu.pipeline_mode<synchronous>, transform_indices = @transform_6, window_bounds = array<i64: 1, 512>}, {transform_indices = @transform_7, window_bounds = array<i64: 16, 128>}]} {
    %c0 = arith.constant 0 : index
    %c0_0 = arith.constant 0 : index
    %0 = vector.load %arg1[%c0, %c0_0] : memref<16x256xf32, #tpu.memory_space<vmem>>, vector<16x256xf32>
    %c0_1 = arith.constant 0 : index
    %c0_2 = arith.constant 0 : index
    %1 = vector.load %arg2[%c0_1, %c0_2] : memref<16x128xf32, #tpu.memory_space<vmem>>, vector<16x128xf32>
    %c0_3 = arith.constant 0 : index
    %c0_4 = arith.constant 0 : index
    %2 = vector.load %arg7[%c0_3, %c0_4] : memref<1x512xf32, #tpu.memory_space<vmem>>, vector<1x256xf32>
    %c0_5 = arith.constant 0 : index
    %c256 = arith.constant 256 : index
    %3 = vector.load %arg7[%c0_5, %c256] : memref<1x512xf32, #tpu.memory_space<vmem>>, vector<1x128xf32>
    %c0_6 = arith.constant 0 : index
    %c384 = arith.constant 384 : index
    %4 = vector.load %arg7[%c0_6, %c384] : memref<1x512xf32, #tpu.memory_space<vmem>>, vector<1x128xf32>
    %c0_7 = arith.constant 0 : index
    %c0_8 = arith.constant 0 : index
    %5 = vector.load %arg3[%c0_7, %c0_8] : memref<256x256xf32, #tpu.memory_space<vmem>>, vector<256x256xf32>
    %cst = arith.constant dense<0.000000e+00> : vector<16x256xf32>
    %6 = tpu.matmul %0, %5, %cst {dimension_numbers = #tpu.dot_dimension_numbers<[1], [0], [0], [1], [0, 0, 1, 1], [], []>} : vector<16x256xf32>, vector<256x256xf32>, vector<16x256xf32> -> vector<16x256xf32>
    %c0_9 = arith.constant 0 : index
    %c0_10 = arith.constant 0 : index
    %7 = vector.load %arg4[%c0_9, %c0_10] : memref<128x256xf32, #tpu.memory_space<vmem>>, vector<128x256xf32>
    %cst_11 = arith.constant dense<0.000000e+00> : vector<16x256xf32>
    %8 = tpu.matmul %1, %7, %cst_11 {dimension_numbers = #tpu.dot_dimension_numbers<[1], [0], [0], [1], [0, 0, 1, 1], [], []>} : vector<16x128xf32>, vector<128x256xf32>, vector<16x256xf32> -> vector<16x256xf32>
    %9 = arith.addf %6, %8 : vector<16x256xf32>
    %10 = vector.broadcast %2 : vector<1x256xf32> to vector<16x256xf32>
    %11 = arith.addf %9, %10 : vector<16x256xf32>
    %c0_12 = arith.constant 0 : index
    %c0_13 = arith.constant 0 : index
    %12 = vector.load %arg5[%c0_12, %c0_13] : memref<256x128xf32, #tpu.memory_space<vmem>>, vector<256x128xf32>
    %cst_14 = arith.constant dense<0.000000e+00> : vector<16x128xf32>
    %13 = tpu.matmul %0, %12, %cst_14 {dimension_numbers = #tpu.dot_dimension_numbers<[1], [0], [0], [1], [0, 0, 1, 1], [], []>} : vector<16x256xf32>, vector<256x128xf32>, vector<16x128xf32> -> vector<16x128xf32>
    %14 = vector.broadcast %3 : vector<1x128xf32> to vector<16x128xf32>
    %15 = arith.addf %13, %14 : vector<16x128xf32>
    %c0_15 = arith.constant 0 : index
    %c0_16 = arith.constant 0 : index
    %16 = vector.load %arg6[%c0_15, %c0_16] : memref<128x128xf32, #tpu.memory_space<vmem>>, vector<128x128xf32>
    %cst_17 = arith.constant dense<0.000000e+00> : vector<16x128xf32>
    %17 = tpu.matmul %1, %16, %cst_17 {dimension_numbers = #tpu.dot_dimension_numbers<[1], [0], [0], [1], [0, 0, 1, 1], [], []>} : vector<16x128xf32>, vector<128x128xf32>, vector<16x128xf32> -> vector<16x128xf32>
    %18 = vector.broadcast %4 : vector<1x128xf32> to vector<16x128xf32>
    %19 = arith.addf %17, %18 : vector<16x128xf32>
    %cst_18 = arith.constant 5.000000e-01 : f32
    %20 = vector.broadcast %cst_18 : f32 to vector<16x256xf32>
    %21 = arith.mulf %20, %11 : vector<16x256xf32>
    %22 = math.tanh %21 : vector<16x256xf32>
    %cst_19 = arith.constant 1.000000e+00 : f32
    %23 = vector.broadcast %cst_19 : f32 to vector<16x256xf32>
    %24 = arith.addf %23, %22 : vector<16x256xf32>
    %cst_20 = arith.constant 5.000000e-01 : f32
    %25 = vector.broadcast %cst_20 : f32 to vector<16x256xf32>
    %26 = arith.mulf %25, %24 : vector<16x256xf32>
    %27 = vector.extract_strided_slice %26 {offsets = [0, 0], sizes = [16, 128], strides = [1, 1]} : vector<16x256xf32> to vector<16x128xf32>
    %28 = vector.extract_strided_slice %26 {offsets = [0, 128], sizes = [16, 128], strides = [1, 1]} : vector<16x256xf32> to vector<16x128xf32>
    %29 = arith.mulf %27, %19 : vector<16x128xf32>
    %30 = arith.addf %15, %29 : vector<16x128xf32>
    %31 = math.tanh %30 : vector<16x128xf32>
    %32 = arith.subf %1, %31 : vector<16x128xf32>
    %33 = arith.mulf %28, %32 : vector<16x128xf32>
    %34 = arith.addf %31, %33 : vector<16x128xf32>
    %c0_21 = arith.constant 0 : index
    %c0_22 = arith.constant 0 : index
    %35 = vector.load %arg8[%c0_21, %c0_22] : memref<16x128xf32, #tpu.memory_space<vmem>>, vector<16x128xf32>
    tpu.vector_store %arg8[%c0_21, %c0_22], %34 {strides = array<i32>} : memref<16x128xf32, #tpu.memory_space<vmem>>, vector<16x128xf32>,
    return
  }
  func.func @transform_0(%arg0: i32) -> (i32, i32) {
    %c0_i32 = arith.constant 0 : i32
    %c0_i32_0 = arith.constant 0 : i32
    return %arg0, %c0_i32 : i32, i32
  }
  func.func @transform_1(%arg0: i32) -> (i32, i32) {
    %c0_i32 = arith.constant 0 : i32
    %c0_i32_0 = arith.constant 0 : i32
    return %arg0, %c0_i32 : i32, i32
  }
  func.func @transform_2(%arg0: i32) -> (i32, i32) {
    %c0_i32 = arith.constant 0 : i32
    %c0_i32_0 = arith.constant 0 : i32
    %c0_i32_1 = arith.constant 0 : i32
    return %c0_i32, %c0_i32_0 : i32, i32
  }
  func.func @transform_3(%arg0: i32) -> (i32, i32) {
    %c0_i32 = arith.constant 0 : i32
    %c0_i32_0 = arith.constant 0 : i32
    %c0_i32_1 = arith.constant 0 : i32
    return %c0_i32, %c0_i32_0 : i32, i32
  }
  func.func @transform_4(%arg0: i32) -> (i32, i32) {
    %c0_i32 = arith.constant 0 : i32
    %c0_i32_0 = arith.constant 0 : i32
    %c0_i32_1 = arith.constant 0 : i32
    return %c0_i32, %c0_i32_0 : i32, i32
  }
  func.func @transform_5(%arg0: i32) -> (i32, i32) {
    %c0_i32 = arith.constant 0 : i32
    %c0_i32_0 = arith.constant 0 : i32
    %c0_i32_1 = arith.constant 0 : i32
    return %c0_i32, %c0_i32_0 : i32, i32
  }
  func.func @transform_6(%arg0: i32) -> (i32, i32) {
    %c0_i32 = arith.constant 0 : i32
    %c0_i32_0 = arith.constant 0 : i32
    %c0_i32_1 = arith.constant 0 : i32
    return %c0_i32, %c0_i32_0 : i32, i32
  }
  func.func @transform_7(%arg0: i32) -> (i32, i32) {
    %c0_i32 = arith.constant 0 : i32
    %c0_i32_0 = arith.constant 0 : i32
    return %arg0, %c0_i32 : i32, i32
  }
}

</mosaic_0001>

<llo_original>
// kernel: tpu_custom_call.1
$region0: #{tpu_custom_call.1}
  #allocation0 [shape = 'u32[]', space=smem, size = 0x4, offset = 0x4, fixed_abs, tag = 'smem constant byte address 0x4 - core index']
  #allocation1 [shape = 'u32[144,128]{1,0:T(1,128)}', space=vmem, size = 0x12000, scoped, tag = 'internal scratch']
  %s0 = inlined_call_operand.hbm [shape: f32[24,256], index: 0, kind: input, shape index: {}]
  %s1 = inlined_call_operand.hbm [shape: f32[24,128], index: 1, kind: input, shape index: {}]
  %s2 = inlined_call_operand.hbm [shape: f32[256,256], index: 2, kind: input, shape index: {}]
  %s3 = inlined_call_operand.hbm [shape: f32[128,256], index: 3, kind: input, shape index: {}]
  %s4 = inlined_call_operand.hbm [shape: f32[256,128], index: 4, kind: input, shape index: {}]
  %s5 = inlined_call_operand.hbm [shape: f32[128,128], index: 5, kind: input, shape index: {}]
  %s6 = inlined_call_operand.vmem [shape: f32[1,512], index: 6, kind: input, shape index: {}]
  %s7 = inlined_call_operand.hbm [shape: f32[24,128], index: 7, kind: output, shape index: {}]
  %s8 = sld [smem:[#allocation0]]
  $region85: #{tpu_custom_call.1} parent=0
    _
  %s10 = ssub.s32 1, %s8
  %s11 = scalar_select 0, %s10, %s8
  $region1: #{tpu_custom_call.1} parent=0
    #allocation2 [shape = 'u8[32768]{0}', space=vmem, size = 0x8000, scoped, tag = 'input window, operand 0']
    #allocation3 [shape = 's32[2]{0}', space=sflag, size = 0x8, scoped, tag = 'scoped memory for tpu_custom_call.1']
    #allocation4 [shape = 's32[2]{0}', space=sflag, size = 0x8, scoped, tag = 'scoped memory for tpu_custom_call.1']
    #allocation5 [shape = 'u8[16384]{0}', space=vmem, size = 0x4000, scoped, tag = 'input window, operand 1']
    #allocation6 [shape = 's32[2]{0}', space=sflag, size = 0x8, scoped, tag = 'scoped memory for tpu_custom_call.1']
    #allocation7 [shape = 'u8[262144]{0}', space=vmem, size = 0x40000, scoped, tag = 'input window, operand 2, single buffered']
    #allocation8 [shape = 'u8[131072]{0}', space=vmem, size = 0x20000, scoped, tag = 'input window, operand 3, single buffered']
    #allocation9 [shape = 's32[1]{0}', space=sflag, size = 0x4, scoped, tag = 'scoped memory for tpu_custom_call.1']
    #allocation10 [shape = 'u8[131072]{0}', space=vmem, size = 0x20000, scoped, tag = 'input window, operand 4, single buffered']
    #allocation11 [shape = 'u8[65536]{0}', space=vmem, size = 0x10000, scoped, tag = 'input window, operand 5, single buffered']
    #allocation12 [shape = 's32[1]{0}', space=sflag, size = 0x4, scoped, tag = 'scoped memory for tpu_custom_call.1']
    #allocation13 [shape = 'u8[16384]{0}', space=vmem, size = 0x4000, scoped, tag = 'output window, operand 0']
    %12 = vsyncpa [#allocation3], 0
    %s13 = scalar_lea.sflag [#allocation3], 1
    %14 = vsyncpa %s13, 0
    %15 = vsyncpa [#allocation6], 0
    %s16 = scalar_lea.sflag [#allocation6], 1
    %17 = vsyncpa %s16, 0
    %18 = vsyncpa [#allocation9], 0
    %19 = vsyncpa [#allocation12], 0
    %20 = vsyncpa [#allocation4], 0
    %s21 = scalar_lea.sflag [#allocation4], 1
    %22 = vsyncpa %s21, 0
    loop: start=0, step=1, limit=4
    $region2: #{tpu_custom_call.1} parent=1 // loop_pre_header
      _
    $region3: #{tpu_custom_call.1} parent=1 // loop_header
      %s24 = sphi 0, %s28
      %p25 = scmp.ge.s32.totalorder %s24, 4
      %s34 = sphi 0, %s36
      %s37 = sphi 0, %s34
      %s38 = sphi 0, %s37
      %s54 = sphi 0, %s38
      %s60 = sphi 0, %s62
      %s63 = sphi 0, %s60
      %s64 = sphi 0, %s63
      %s80 = sphi 0, %s64
      %s84 = sphi 0, %s84
      %s86 = sphi 0, %s84
      %s87 = sphi 0, %s86
      %s101 = sphi 0, %s87
      %s105 = sphi 0, %s105
      %s107 = sphi 0, %s105
      %s108 = sphi 0, %s107
      %s122 = sphi 0, %s108
      %s126 = sphi 0, %s126
      %s128 = sphi 0, %s126
      %s129 = sphi 0, %s128
      %s143 = sphi 0, %s129
      %s147 = sphi 0, %s147
      %s149 = sphi 0, %s147
      %s150 = sphi 0, %s149
      %s164 = sphi 0, %s150
      %s168 = sphi 0, %s168
      %s170 = sphi 0, %s168
      %s171 = sphi 0, %s170
      %s185 = sphi 0, %s171
      %s191 = sphi 0, %s193
      %s194 = sphi 0, %s191
      %s195 = sphi 0, %s194
      %s211 = sphi 0, %s195
    $region4: #{tpu_custom_call.1} parent=1 // loop_header_branch
      %27 = sbr.rel (%p25) target = $region8
    $region5: #{tpu_custom_call.1} parent=1 // loop_body
      %s29 = ssub.s32 %s24, 1
      %s30 = ssub.s32 %s24, 2
      %s31 = sadd.s32 %s24, 1
      %s32 = ssub.s32 %s24, %s31
      %p33 = scmp.eq.s32.totalorder %s32, 0
      %s35 = sadd.s32 %s34, 1
      %s36 = scalar_select %p33, %s34, %s35
      %p39 = pneg %p33
      %p40 = scmp.eq.s32.totalorder %s24, 1
      %p41 = por %p39, %p40
      %p42 = scmp.ne.s32.totalorder %s34, %s37
      %p43 = scmp.eq.s32.totalorder %s24, 0
      %p44 = por %p42, %p43
      %p45 = scmp.ne.s32.totalorder %s34, %s37
      %p46 = scmp.eq.s32.totalorder %s29, 1
      %p47 = por %p45, %p46
      %p48 = scmp.ne.s32.totalorder %s37, %s38
      %p49 = scmp.eq.s32.totalorder %s29, 0
      %p50 = por %p48, %p49
      %p51 = scmp.ne.s32.totalorder %s37, %s38
      %p52 = scmp.eq.s32.totalorder %s30, 1
      %p53 = por %p51, %p52
      %p55 = scmp.ne.s32.totalorder %s38, %s54
      %p56 = scmp.eq.s32.totalorder %s30, 0
      %p57 = por %p55, %p56
      %s58 = ssub.s32 %s24, %s31
      %p59 = scmp.eq.s32.totalorder %s58, 0
      %s61 = sadd.s32 %s60, 1
      %s62 = scalar_select %p59, %s60, %s61
      %p65 = pneg %p59
      %p66 = scmp.eq.s32.totalorder %s24, 1
      %p67 = por %p65, %p66
      %p68 = scmp.ne.s32.totalorder %s60, %s63
      %p69 = scmp.eq.s32.totalorder %s24, 0
      %p70 = por %p68, %p69
      %p71 = scmp.ne.s32.totalorder %s60, %s63
      %p72 = scmp.eq.s32.totalorder %s29, 1
      %p73 = por %p71, %p72
      %p74 = scmp.ne.s32.totalorder %s63, %s64
      %p75 = scmp.eq.s32.totalorder %s29, 0
      %p76 = por %p74, %p75
      %p77 = scmp.ne.s32.totalorder %s63, %s64
      %p78 = scmp.eq.s32.totalorder %s30, 1
      %p79 = por %p77, %p78
      %p81 = scmp.ne.s32.totalorder %s64, %s80
      %p82 = scmp.eq.s32.totalorder %s30, 0
      %p83 = por %p81, %p82
      %s85 = sadd.s32 %s84, 1
      %p88 = scmp.eq.s32.totalorder %s24, 1
      %p89 = scmp.ne.s32.totalorder %s84, %s86
      %p90 = scmp.eq.s32.totalorder %s24, 0
      %p91 = por %p89, %p90
      %p92 = scmp.ne.s32.totalorder %s84, %s86
      %p93 = scmp.eq.s32.totalorder %s29, 1
      %p94 = por %p92, %p93
      %p95 = scmp.ne.s32.totalorder %s86, %s87
      %p96 = scmp.eq.s32.totalorder %s29, 0
      %p97 = por %p95, %p96
      %p98 = scmp.ne.s32.totalorder %s86, %s87
      %p99 = scmp.eq.s32.totalorder %s30, 1
      %p100 = por %p98, %p99
      %p102 = scmp.ne.s32.totalorder %s87, %s101
      %p103 = scmp.eq.s32.totalorder %s30, 0
      %p104 = por %p102, %p103
      %s106 = sadd.s32 %s105, 1
      %p109 = scmp.eq.s32.totalorder %s24, 1
      %p110 = scmp.ne.s32.totalorder %s105, %s107
      %p111 = scmp.eq.s32.totalorder %s24, 0
      %p112 = por %p110, %p111
      %p113 = scmp.ne.s32.totalorder %s105, %s107
      %p114 = scmp.eq.s32.totalorder %s29, 1
      %p115 = por %p113, %p114
      %p116 = scmp.ne.s32.totalorder %s107, %s108
      %p117 = scmp.eq.s32.totalorder %s29, 0
      %p118 = por %p116, %p117
      %p119 = scmp.ne.s32.totalorder %s107, %s108
      %p120 = scmp.eq.s32.totalorder %s30, 1
      %p121 = por %p119, %p120
      %p123 = scmp.ne.s32.totalorder %s108, %s122
      %p124 = scmp.eq.s32.totalorder %s30, 0
      %p125 = por %p123, %p124
      %s127 = sadd.s32 %s126, 1
      %p130 = scmp.eq.s32.totalorder %s24, 1
      %p131 = scmp.ne.s32.totalorder %s126, %s128
      %p132 = scmp.eq.s32.totalorder %s24, 0
      %p133 = por %p131, %p132
      %p134 = scmp.ne.s32.totalorder %s126, %s128
      %p135 = scmp.eq.s32.totalorder %s29, 1
      %p136 = por %p134, %p135
      %p137 = scmp.ne.s32.totalorder %s128, %s129
      %p138 = scmp.eq.s32.totalorder %s29, 0
      %p139 = por %p137, %p138
      %p140 = scmp.ne.s32.totalorder %s128, %s129
      %p141 = scmp.eq.s32.totalorder %s30, 1
      %p142 = por %p140, %p141
      %p144 = scmp.ne.s32.totalorder %s129, %s143
      %p145 = scmp.eq.s32.totalorder %s30, 0
      %p146 = por %p144, %p145
      %s148 = sadd.s32 %s147, 1
      %p151 = scmp.eq.s32.totalorder %s24, 1
      %p152 = scmp.ne.s32.totalorder %s147, %s149
      %p153 = scmp.eq.s32.totalorder %s24, 0
      %p154 = por %p152, %p153
      %p155 = scmp.ne.s32.totalorder %s147, %s149
      %p156 = scmp.eq.s32.totalorder %s29, 1
      %p157 = por %p155, %p156
      %p158 = scmp.ne.s32.totalorder %s149, %s150
      %p159 = scmp.eq.s32.totalorder %s29, 0
      %p160 = por %p158, %p159
      %p161 = scmp.ne.s32.totalorder %s149, %s150
      %p162 = scmp.eq.s32.totalorder %s30, 1
      %p163 = por %p161, %p162
      %p165 = scmp.ne.s32.totalorder %s150, %s164
      %p166 = scmp.eq.s32.totalorder %s30, 0
      %p167 = por %p165, %p166
      %s169 = sadd.s32 %s168, 1
      %p172 = scmp.eq.s32.totalorder %s24, 1
      %p173 = scmp.ne.s32.totalorder %s168, %s170
      %p174 = scmp.eq.s32.totalorder %s24, 0
      %p175 = por %p173, %p174
      %p176 = scmp.ne.s32.totalorder %s168, %s170
      %p177 = scmp.eq.s32.totalorder %s29, 1
      %p178 = por %p176, %p177
      %p179 = scmp.ne.s32.totalorder %s170, %s171
      %p180 = scmp.eq.s32.totalorder %s29, 0
      %p181 = por %p179, %p180
      %p182 = scmp.ne.s32.totalorder %s170, %s171
      %p183 = scmp.eq.s32.totalorder %s30, 1
      %p184 = por %p182, %p183
      %p186 = scmp.ne.s32.totalorder %s171, %s185
      %p187 = scmp.eq.s32.totalorder %s30, 0
      %p188 = por %p186, %p187
      %s189 = ssub.s32 %s24, %s31
      %p190 = scmp.eq.s32.totalorder %s189, 0
      %s192 = sadd.s32 %s191, 1
      %s193 = scalar_select %p190, %s191, %s192
      %p196 = pneg %p190
      %p197 = scmp.eq.s32.totalorder %s24, 1
      %p198 = por %p196, %p197
      %p199 = scmp.ne.s32.totalorder %s191, %s194
      %p200 = scmp.eq.s32.totalorder %s24, 0
      %p201 = por %p199, %p200
      %p202 = scmp.ne.s32.totalorder %s191, %s194
      %p203 = scmp.eq.s32.totalorder %s29, 1
      %p204 = por %p202, %p203
      %p205 = scmp.ne.s32.totalorder %s194, %s195
      %p206 = scmp.eq.s32.totalorder %s29, 0
      %p207 = por %p205, %p206
      %p208 = scmp.ne.s32.totalorder %s194, %s195
      %p209 = scmp.eq.s32.totalorder %s30, 1
      %p210 = por %p208, %p209
      %p212 = scmp.ne.s32.totalorder %s195, %s211
      %p213 = scmp.eq.s32.totalorder %s30, 0
      %p214 = por %p212, %p213
      %p215 = scmp.le.s32.totalorder 1, %s24
      %p216 = scmp.lt.s32.totalorder %s24, 3
      %p217 = pnand %p215, %p216
      %p218 = pneg %p217
      // Predicated region
      $region9: #{tpu_custom_call.1} parent=5 // pred_check
        _
      $region10: #{tpu_custom_call.1} parent=5 // pred_check_branch
        %220 = sbr.rel (%p217) target = $region12
      $region11: #{tpu_custom_call.1} parent=5 // pred_region
        %s221 = ssub.s32 %s24, 1
        // Predicated region
        $region13: #{tpu_custom_call.1} parent=11 // pred_check
          %p222 = pneg %p97
        $region14: #{tpu_custom_call.1} parent=11 // pred_check_branch
          %224 = sbr.rel (%p222) target = $region16
        $region15: #{tpu_custom_call.1} parent=11 // pred_region
          %s226 = ssub.s32 8192, 8192
          %227 = vsyncadd [#allocation6], %s226
          %s228 = sshll.u32 [#allocation7], 4
          %s229 = int_to_ptr.vmem [resolvable:$true] %s228
          %234 = dma.hbm_to_vmem [thread:$0]  %s2, 8192, %s229, [#allocation6], 256, 256, 16
        $region16: #{tpu_custom_call.1} parent=11 // pred_fallthru
          _
        // Predicated region
        $region17: #{tpu_custom_call.1} parent=11 // pred_check
          %p235 = pneg %p118
        $region18: #{tpu_custom_call.1} parent=11 // pred_check_branch
          %237 = sbr.rel (%p235) target = $region20
        $region19: #{tpu_custom_call.1} parent=11 // pred_region
          %s239 = ssub.s32 4096, 4096
          %240 = vsyncadd [#allocation9], %s239
          %s241 = sshll.u32 [#allocation8], 4
          %s242 = int_to_ptr.vmem [resolvable:$true] %s241
          %247 = dma.hbm_to_vmem [thread:$0]  %s3, 4096, %s242, [#allocation9], 256, 256, 16
        $region20: #{tpu_custom_call.1} parent=11 // pred_fallthru
          _
        // Predicated region
        $region21: #{tpu_custom_call.1} parent=11 // pred_check
          %p248 = pneg %p139
        $region22: #{tpu_custom_call.1} parent=11 // pred_check_branch
          %250 = sbr.rel (%p248) target = $region24
        $region23: #{tpu_custom_call.1} parent=11 // pred_region
          %s252 = ssub.s32 4096, 4096
          %253 = vsyncadd [#allocation9], %s252
          %s254 = sshll.u32 [#allocation10], 4
          %s255 = int_to_ptr.vmem [resolvable:$true] %s254
          %260 = dma.hbm_to_vmem [thread:$0]  %s4, 4096, %s255, [#allocation9], 128, 128, 8
        $region24: #{tpu_custom_call.1} parent=11 // pred_fallthru
          _
        // Predicated region
        $region25: #{tpu_custom_call.1} parent=11 // pred_check
          %p261 = pneg %p160
        $region26: #{tpu_custom_call.1} parent=11 // pred_check_branch
          %263 = sbr.rel (%p261) target = $region28
        $region27: #{tpu_custom_call.1} parent=11 // pred_region
          %s265 = ssub.s32 2048, 2048
          %266 = vsyncadd [#allocation12], %s265
          %s267 = sshll.u32 [#allocation11], 4
          %s268 = int_to_ptr.vmem [resolvable:$true] %s267
          %273 = dma.hbm_to_vmem [thread:$0]  %s5, 2048, %s268, [#allocation12], 128, 128, 8
        $region28: #{tpu_custom_call.1} parent=11 // pred_fallthru
          _
        // Predicated region
        $region29: #{tpu_custom_call.1} parent=11 // pred_check
          %p274 = pneg %p181
        $region30: #{tpu_custom_call.1} parent=11 // pred_check_branch
          %276 = sbr.rel (%p274) target = $region32
        $region31: #{tpu_custom_call.1} parent=11 // pred_region
          _
        $region32: #{tpu_custom_call.1} parent=11 // pred_fallthru
          _
      $region12: #{tpu_custom_call.1} parent=5 // pred_fallthru
        _
      %p277 = scmp.lt.s32.totalorder %s24, 2
      // Predicated region
      $region33: #{tpu_custom_call.1} parent=5 // pred_check
        %p278 = pneg %p277
      $region34: #{tpu_custom_call.1} parent=5 // pred_check_branch
        %280 = sbr.rel (%p278) target = $region36
      $region35: #{tpu_custom_call.1} parent=5 // pred_region
        // Predicated region
        $region37: #{tpu_custom_call.1} parent=35 // pred_check
          %p281 = pneg %p44
        $region38: #{tpu_custom_call.1} parent=35 // pred_check_branch
          %283 = sbr.rel (%p281) target = $region40
        $region39: #{tpu_custom_call.1} parent=35 // pred_region
          %s284 = sand.u32 %s34, 1
          %s285 = scalar_lea.sflag [#allocation3], %s284
          %s286 = sand.u32 %s34, 1
          %s287 = smul.addr %s286, 32
          %s288 = scalar_lea.vmem [#allocation2], %s287
          %s289 = smul.u32 2, %s24
          %s290 = ssub.s32 3, %s289
          %p291 = scmp.lt.s32.totalorder %s290, 2
          %s292 = scalar_select %p291, %s290, 2
          %s293 = smul.u32 128, %s292
          %s294 = smul.u32 %s293, 2
          %s296 = ssub.s32 512, %s294
          %297 = vsyncadd %s285, %s296
          %p298 = scmp.ne.s32.totalorder 0, %s294
          %s299 = smul.addr %s289, 2
          %s300 = smul.addr %s299, 128
          %s301 = scalar_lea.hbm %s0, %s300
          %s302 = smul.u32 16, %s292
          %s303 = sshll.u32 %s288, 4
          %s304 = int_to_ptr.vmem [resolvable:$true] %s303
          %s305 = sshll.u32 %s302, 4
          %309 = dma.hbm_to_vmem [thread:$0]  (%p298), %s301, %s305, %s304, %s285, 256, 256, 16
        $region40: #{tpu_custom_call.1} parent=35 // pred_fallthru
          _
        // Predicated region
        $region41: #{tpu_custom_call.1} parent=35 // pred_check
          %p310 = pneg %p70
        $region42: #{tpu_custom_call.1} parent=35 // pred_check_branch
          %312 = sbr.rel (%p310) target = $region44
        $region43: #{tpu_custom_call.1} parent=35 // pred_region
          %s313 = sand.u32 %s24, 1
          %s314 = scalar_lea.sflag [#allocation6], %s313
          %s315 = sand.u32 %s60, 1
          %s316 = smul.addr %s315, 16
          %s317 = scalar_lea.vmem [#allocation5], %s316
          %s318 = smul.u32 2, %s24
          %s319 = ssub.s32 3, %s318
          %p320 = scmp.lt.s32.totalorder %s319, 2
          %s321 = scalar_select %p320, %s319, 2
          %s322 = smul.u32 128, %s321
          %s324 = ssub.s32 256, %s322
          %325 = vsyncadd %s314, %s324
          %p326 = scmp.ne.s32.totalorder 0, %s322
          %s327 = smul.addr %s318, 128
          %s328 = scalar_lea.hbm %s1, %s327
          %s329 = smul.u32 8, %s321
          %s330 = sshll.u32 %s317, 4
          %s331 = int_to_ptr.vmem [resolvable:$true] %s330
          %s332 = sshll.u32 %s329, 4
          %336 = dma.hbm_to_vmem [thread:$0]  (%p326), %s328, %s332, %s331, %s314, 128, 128, 8
        $region44: #{tpu_custom_call.1} parent=35 // pred_fallthru
          _
      $region36: #{tpu_custom_call.1} parent=5 // pred_fallthru
        _
      %p337 = scmp.le.s32.totalorder 1, %s24
      %p338 = scmp.lt.s32.totalorder %s24, 3
      %p339 = pnand %p337, %p338
      %p340 = pneg %p339
      // Predicated region
      $region45: #{tpu_custom_call.1} parent=5 // pred_check
        _
      $region46: #{tpu_custom_call.1} parent=5 // pred_check_branch
        %342 = sbr.rel (%p339) target = $region48
      $region47: #{tpu_custom_call.1} parent=5 // pred_region
        %s343 = ssub.s32 %s24, 1
        %s344 = sand.u32 %s37, 1
        %s345 = scalar_lea.sflag [#allocation3], %s344
        %s346 = sand.u32 %s37, 1
        %s347 = smul.addr %s346, 32
        %s348 = scalar_lea.vmem [#allocation2], %s347
        // Predicated region
        $region49: #{tpu_custom_call.1} parent=47 // pred_check
          %p349 = pneg %p50
        $region50: #{tpu_custom_call.1} parent=47 // pred_check_branch
          %351 = sbr.rel (%p349) target = $region52
        $region51: #{tpu_custom_call.1} parent=47 // pred_region
          %352 = dma.done %s345, 512
        $region52: #{tpu_custom_call.1} parent=47 // pred_fallthru
          _
        %s353 = sand.u32 %s29, 1
        %s354 = scalar_lea.sflag [#allocation6], %s353
        %s355 = sand.u32 %s63, 1
        %s356 = smul.addr %s355, 16
        %s357 = scalar_lea.vmem [#allocation5], %s356
        // Predicated region
        $region53: #{tpu_custom_call.1} parent=47 // pred_check
          %p358 = pneg %p76
        $region54: #{tpu_custom_call.1} parent=47 // pred_check_branch
          %360 = sbr.rel (%p358) target = $region56
        $region55: #{tpu_custom_call.1} parent=47 // pred_region
          %361 = dma.done %s354, 256
        $region56: #{tpu_custom_call.1} parent=47 // pred_fallthru
          _
        // Predicated region
        $region57: #{tpu_custom_call.1} parent=47 // pred_check
          %p362 = pneg %p97
        $region58: #{tpu_custom_call.1} parent=47 // pred_check_branch
          %364 = sbr.rel (%p362) target = $region60
        $region59: #{tpu_custom_call.1} parent=47 // pred_region
          %365 = dma.done [#allocation6], 8192
        $region60: #{tpu_custom_call.1} parent=47 // pred_fallthru
          _
        // Predicated region
        $region61: #{tpu_custom_call.1} parent=47 // pred_check
          %p366 = pneg %p118
        $region62: #{tpu_custom_call.1} parent=47 // pred_check_branch
          %368 = sbr.rel (%p366) target = $region64
        $region63: #{tpu_custom_call.1} parent=47 // pred_region
          %369 = dma.done [#allocation9], 4096
        $region64: #{tpu_custom_call.1} parent=47 // pred_fallthru
          _
        // Predicated region
        $region65: #{tpu_custom_call.1} parent=47 // pred_check
          %p370 = pneg %p139
        $region66: #{tpu_custom_call.1} parent=47 // pred_check_branch
          %372 = sbr.rel (%p370) target = $region68
        $region67: #{tpu_custom_call.1} parent=47 // pred_region
          %373 = dma.done [#allocation9], 4096
        $region68: #{tpu_custom_call.1} parent=47 // pred_fallthru
          _
        // Predicated region
        $region69: #{tpu_custom_call.1} parent=47 // pred_check
          %p374 = pneg %p160
        $region70: #{tpu_custom_call.1} parent=47 // pred_check_branch
          %376 = sbr.rel (%p374) target = $region72
        $region71: #{tpu_custom_call.1} parent=47 // pred_region
          %377 = dma.done [#allocation12], 2048
        $region72: #{tpu_custom_call.1} parent=47 // pred_fallthru
          _
        %s378 = sand.u32 %s37, 1
        %s379 = scalar_lea.sflag [#allocation3], %s378
        %s380 = sand.u32 %s37, 1
        %s381 = smul.addr %s380, 32
        %s382 = scalar_lea.vmem [#allocation2], %s381
        %p383 = pneg %p50
        %p384 = pneg %p47
        %s385 = sand.u32 %s29, 1
        %s386 = scalar_lea.sflag [#allocation6], %s385
        %s387 = sand.u32 %s63, 1
        %s388 = smul.addr %s387, 16
        %s389 = scalar_lea.vmem [#allocation5], %s388
        %p390 = pneg %p76
        %p391 = pneg %p73
        %p392 = pneg %p97
        %p393 = pneg %p94
        %p394 = pneg %p118
        %p395 = pneg %p115
        %p396 = pneg %p139
        %p397 = pneg %p136
        %p398 = pneg %p160
        %p399 = pneg %p157
        %p400 = pneg %p181
        %p401 = pneg %p178
        %p402 = pneg %p207
        %p403 = pneg %p204
        %s404 = sand.u32 %s194, 1
        %s405 = scalar_lea.sflag [#allocation4], %s404
        %s406 = sand.u32 %s194, 1
        %s407 = smul.addr %s406, 16
        %s408 = scalar_lea.vmem [#allocation13], %s407
        %s409 = smul.u32 2, %s29
        %s410 = ssub.s32 3, %s409
        %p411 = scmp.lt.s32.totalorder %s410, 2
        %s412 = scalar_select %p411, %s410, 2
        %s413 = smul.u32 128, %s412
        %s414 = smul.u32 %s413, 2
        %s415 = smul.u32 2, %s29
        %s416 = ssub.s32 3, %s415
        %p417 = scmp.lt.s32.totalorder %s416, 2
        %s418 = scalar_select %p417, %s416, 2
        %s419 = smul.u32 128, %s418
        %s420 = smul.u32 2, %s29
        %s421 = ssub.s32 3, %s420
        %p422 = scmp.lt.s32.totalorder %s421, 2
        %s423 = scalar_select %p422, %s421, 2
        %s424 = smul.u32 128, %s423
        %v425 = vld [vmem:[%s348] sm:$0xff]
        %v426 = vld [vmem:[%s348 + $0x8] sm:$0xff]
        %v427 = vld [vmem:[%s348 + $0x10] sm:$0xff]
        %v428 = vld [vmem:[%s348 + $0x18] sm:$0xff]
        %v429 = vld [vmem:[%s357] sm:$0xff]
        %v430 = vld [vmem:[%s357 + $0x8] sm:$0xff]
        %v431 = vld [vmem:[%s6] sm:$0x3]
        %v432 = vld [vmem:[%s6 + $0x2] sm:$0x1]
        %v433 = vld [vmem:[%s6 + $0x3] sm:$0x1]
        %v434 = vld [vmem:[#allocation7] sm:$0xff]
        %v435 = vld [vmem:[#allocation7 + $0x8] sm:$0xff]
        %v436 = vld [vmem:[#allocation7 + $0x10] sm:$0xff]
        %v437 = vld [vmem:[#allocation7 + $0x18] sm:$0xff]
        %v438 = vld [vmem:[#allocation7 + $0x20] sm:$0xff]
        %v439 = vld [vmem:[#allocation7 + $0x28] sm:$0xff]
        %v440 = vld [vmem:[#allocation7 + $0x30] sm:$0xff]
        %v441 = vld [vmem:[#allocation7 + $0x38] sm:$0xff]
        %v442 = vld [vmem:[#allocation7 + $0x40] sm:$0xff]
        %v443 = vld [vmem:[#allocation7 + $0x48] sm:$0xff]
        %v444 = vld [vmem:[#allocation7 + $0x50] sm:$0xff]
        %v445 = vld [vmem:[#allocation7 + $0x58] sm:$0xff]
        %v446 = vld [vmem:[#allocation7 + $0x60] sm:$0xff]
        %v447 = vld [vmem:[#allocation7 + $0x68] sm:$0xff]
        %v448 = vld [vmem:[#allocation7 + $0x70] sm:$0xff]
        %v449 = vld [vmem:[#allocation7 + $0x78] sm:$0xff]
        %v450 = vld [vmem:[#allocation7 + $0x80] sm:$0xff]
        %v451 = vld [vmem:[#allocation7 + $0x88] sm:$0xff]
        %v452 = vld [vmem:[#allocation7 + $0x90] sm:$0xff]
        %v453 = vld [vmem:[#allocation7 + $0x98] sm:$0xff]
        %v454 = vld [vmem:[#allocation7 + $0xa0] sm:$0xff]
        %v455 = vld [vmem:[#allocation7 + $0xa8] sm:$0xff]
        %v456 = vld [vmem:[#allocation7 + $0xb0] sm:$0xff]
        %v457 = vld [vmem:[#allocation7 + $0xb8] sm:$0xff]
        %v458 = vld [vmem:[#allocation7 + $0xc0] sm:$0xff]
        %v459 = vld [vmem:[#allocation7 + $0xc8] sm:$0xff]
        %v460 = vld [vmem:[#allocation7 + $0xd0] sm:$0xff]
        %v461 = vld [vmem:[#allocation7 + $0xd8] sm:$0xff]
        %v462 = vld [vmem:[#allocation7 + $0xe0] sm:$0xff]
        %v463 = vld [vmem:[#allocation7 + $0xe8] sm:$0xff]
        %v464 = vld [vmem:[#allocation7 + $0xf0] sm:$0xff]
        %v465 = vld [vmem:[#allocation7 + $0xf8] sm:$0xff]
        %v466 = vld [vmem:[#allocation7 + $0x100] sm:$0xff]
        %v467 = vld [vmem:[#allocation7 + $0x108] sm:$0xff]
        %v468 = vld [vmem:[#allocation7 + $0x110] sm:$0xff]
        %v469 = vld [vmem:[#allocation7 + $0x118] sm:$0xff]
        %v470 = vld [vmem:[#allocation7 + $0x120] sm:$0xff]
        %v471 = vld [vmem:[#allocation7 + $0x128] sm:$0xff]
        %v472 = vld [vmem:[#allocation7 + $0x130] sm:$0xff]
        %v473 = vld [vmem:[#allocation7 + $0x138] sm:$0xff]
        %v474 = vld [vmem:[#allocation7 + $0x140] sm:$0xff]
        %v475 = vld [vmem:[#allocation7 + $0x148] sm:$0xff]
        %v476 = vld [vmem:[#allocation7 + $0x150] sm:$0xff]
        %v477 = vld [vmem:[#allocation7 + $0x158] sm:$0xff]
        %v478 = vld [vmem:[#allocation7 + $0x160] sm:$0xff]
        %v479 = vld [vmem:[#allocation7 + $0x168] sm:$0xff]
        %v480 = vld [vmem:[#allocation7 + $0x170] sm:$0xff]
        %v481 = vld [vmem:[#allocation7 + $0x178] sm:$0xff]
        %v482 = vld [vmem:[#allocation7 + $0x180] sm:$0xff]
        %v483 = vld [vmem:[#allocation7 + $0x188] sm:$0xff]
        %v484 = vld [vmem:[#allocation7 + $0x190] sm:$0xff]
        %v485 = vld [vmem:[#allocation7 + $0x198] sm:$0xff]
        %v486 = vld [vmem:[#allocation7 + $0x1a0] sm:$0xff]
        %v487 = vld [vmem:[#allocation7 + $0x1a8] sm:$0xff]
        %v488 = vld [vmem:[#allocation7 + $0x1b0] sm:$0xff]
        %v489 = vld [vmem:[#allocation7 + $0x1b8] sm:$0xff]
        %v490 = vld [vmem:[#allocation7 + $0x1c0] sm:$0xff]
        %v491 = vld [vmem:[#allocation7 + $0x1c8] sm:$0xff]
        %v492 = vld [vmem:[#allocation7 + $0x1d0] sm:$0xff]
        %v493 = vld [vmem:[#allocation7 + $0x1d8] sm:$0xff]
        %v494 = vld [vmem:[#allocation7 + $0x1e0] sm:$0xff]
        %v495 = vld [vmem:[#allocation7 + $0x1e8] sm:$0xff]
        %v496 = vld [vmem:[#allocation7 + $0x1f0] sm:$0xff]
        %v497 = vld [vmem:[#allocation7 + $0x1f8] sm:$0xff]
        %v498 = vld [vmem:[#allocation8] sm:$0xff]
        %v499 = vld [vmem:[#allocation8 + $0x8] sm:$0xff]
        %v500 = vld [vmem:[#allocation8 + $0x10] sm:$0xff]
        %v501 = vld [vmem:[#allocation8 + $0x18] sm:$0xff]
        %v502 = vld [vmem:[#allocation8 + $0x20] sm:$0xff]
        %v503 = vld [vmem:[#allocation8 + $0x28] sm:$0xff]
        %v504 = vld [vmem:[#allocation8 + $0x30] sm:$0xff]
        %v505 = vld [vmem:[#allocation8 + $0x38] sm:$0xff]
        %v506 = vld [vmem:[#allocation8 + $0x40] sm:$0xff]
        %v507 = vld [vmem:[#allocation8 + $0x48] sm:$0xff]
        %v508 = vld [vmem:[#allocation8 + $0x50] sm:$0xff]
        %v509 = vld [vmem:[#allocation8 + $0x58] sm:$0xff]
        %v510 = vld [vmem:[#allocation8 + $0x60] sm:$0xff]
        %v511 = vld [vmem:[#allocation8 + $0x68] sm:$0xff]
        %v512 = vld [vmem:[#allocation8 + $0x70] sm:$0xff]
        %v513 = vld [vmem:[#allocation8 + $0x78] sm:$0xff]
        %v514 = vld [vmem:[#allocation8 + $0x80] sm:$0xff]
        %v515 = vld [vmem:[#allocation8 + $0x88] sm:$0xff]
        %v516 = vld [vmem:[#allocation8 + $0x90] sm:$0xff]
        %v517 = vld [vmem:[#allocation8 + $0x98] sm:$0xff]
        %v518 = vld [vmem:[#allocation8 + $0xa0] sm:$0xff]
        %v519 = vld [vmem:[#allocation8 + $0xa8] sm:$0xff]
        %v520 = vld [vmem:[#allocation8 + $0xb0] sm:$0xff]
        %v521 = vld [vmem:[#allocation8 + $0xb8] sm:$0xff]
        %v522 = vld [vmem:[#allocation8 + $0xc0] sm:$0xff]
        %v523 = vld [vmem:[#allocation8 + $0xc8] sm:$0xff]
        %v524 = vld [vmem:[#allocation8 + $0xd0] sm:$0xff]
        %v525 = vld [vmem:[#allocation8 + $0xd8] sm:$0xff]
        %v526 = vld [vmem:[#allocation8 + $0xe0] sm:$0xff]
        %v527 = vld [vmem:[#allocation8 + $0xe8] sm:$0xff]
        %v528 = vld [vmem:[#allocation8 + $0xf0] sm:$0xff]
        %v529 = vld [vmem:[#allocation8 + $0xf8] sm:$0xff]
        %530 = vmatprep.subr.mxu0 %v499
        %531 = vmatpush1.msra.mxu0 %v498
        %532 = vmatprep.subr.mxu0 %v501
        %533 = vmatpush1.msra.mxu0 %v500
        %534 = vmatprep.subr.mxu0 %v503
        %535 = vmatpush1.msra.mxu0 %v502
        %536 = vmatprep.subr.mxu0 %v505
        %537 = vmatpush1.msra.mxu0 %v504
        %538 = vmatprep.subr.mxu0 %v507
        %539 = vmatpush1.msra.mxu0 %v506
        %540 = vmatprep.subr.mxu0 %v509
        %541 = vmatpush1.msra.mxu0 %v508
        %542 = vmatprep.subr.mxu0 %v511
        %543 = vmatpush1.msra.mxu0 %v510
        %544 = vmatprep.subr.mxu0 %v513
        %545 = vmatpush1.msra.mxu0 %v512
        %546 = vmatprep.subr.mxu0 %v515
        %547 = vmatpush1.msra.mxu0 %v514
        %548 = vmatprep.subr.mxu0 %v517
        %549 = vmatpush1.msra.mxu0 %v516
        %550 = vmatprep.subr.mxu0 %v519
        %551 = vmatpush1.msra.mxu0 %v518
        %552 = vmatprep.subr.mxu0 %v521
        %553 = vmatpush1.msra.mxu0 %v520
        %554 = vmatprep.subr.mxu0 %v523
        %555 = vmatpush1.msra.mxu0 %v522
        %556 = vmatprep.subr.mxu0 %v525
        %557 = vmatpush1.msra.mxu0 %v524
        %558 = vmatprep.subr.mxu0 %v527
        %559 = vmatpush1.msra.mxu0 %v526
        %560 = vmatprep.subr.mxu0 %v529
        %561 = vmatpush1.msra.mxu0 %v528
        %562 = vmatprep.subr.mxu0 0.0
        %563 = vmatpush1.msra.mxu0 0.0
        %564 = vmatprep.subr.mxu0 0.0
        %565 = vmatpush1.msra.mxu0 0.0
        %566 = vmatprep.subr.mxu0 0.0
        %567 = vmatpush1.msra.mxu0 0.0
        %568 = vmatprep.subr.mxu0 0.0
        %569 = vmatpush1.msra.mxu0 0.0
        %570 = vmatprep.subr.mxu0 0.0
        %571 = vmatpush1.msra.mxu0 0.0
        %572 = vmatprep.subr.mxu0 0.0
        %573 = vmatpush1.msra.mxu0 0.0
        %574 = vmatprep.subr.mxu0 0.0
        %575 = vmatpush1.msra.mxu0 0.0
        %576 = vmatprep.subr.mxu0 0.0
        %577 = vmatpush1.msra.mxu0 0.0
        %578 = vmatprep.subr.mxu0 0.0
        %579 = vmatpush1.msra.mxu0 0.0
        %580 = vmatprep.subr.mxu0 0.0
        %581 = vmatpush1.msra.mxu0 0.0
        %582 = vmatprep.subr.mxu0 0.0
        %583 = vmatpush1.msra.mxu0 0.0
        %584 = vmatprep.subr.mxu0 0.0
        %585 = vmatpush1.msra.mxu0 0.0
        %586 = vmatprep.subr.mxu0 0.0
        %587 = vmatpush1.msra.mxu0 0.0
        %588 = vmatprep.subr.mxu0 0.0
        %589 = vmatpush1.msra.mxu0 0.0
        %590 = vmatprep.subr.mxu0 0.0
        %591 = vmatpush1.msra.mxu0 0.0
        %592 = vmatprep.subr.mxu0 0.0
        %593 = vmatpush1.msra.mxu0 0.0
        %594 = vmatprep.mubr.f32.mxu0 0.0
        %595 = vmatmul.mubr.f32.gmra.mrb[0].mxu0 %v429
        %v596 = vpop.f32.mrb[0].mxu0
        %v597 = vadd.f32 0.0, %v596
        %v598 = vpop.f32.mrb[0].mxu0
        %v599 = vadd.f32 0.0, %v598
        %600 = vmatprep.mubr.f32.mxu0 0.0
        %601 = vmatmul.mubr.f32.gmra.mrb[0].mxu0 %v430
        %v602 = vpop.f32.mrb[0].mxu0
        %v603 = vadd.f32 0.0, %v602
        %v604 = vpop.f32.mrb[0].mxu0
        %v605 = vadd.f32 0.0, %v604
        %606 = vdwg.mxu0
        %607 = vmatprep.subr.mxu0 %v435
        %608 = vmatpush1.msra.mxu0 %v434
        %609 = vmatprep.subr.mxu0 %v437
        %610 = vmatpush1.msra.mxu0 %v436
        %611 = vmatprep.subr.mxu0 %v439
        %612 = vmatpush1.msra.mxu0 %v438
        %613 = vmatprep.subr.mxu0 %v441
        %614 = vmatpush1.msra.mxu0 %v440
        %615 = vmatprep.subr.mxu0 %v443
        %616 = vmatpush1.msra.mxu0 %v442
        %617 = vmatprep.subr.mxu0 %v445
        %618 = vmatpush1.msra.mxu0 %v444
        %619 = vmatprep.subr.mxu0 %v447
        %620 = vmatpush1.msra.mxu0 %v446
        %621 = vmatprep.subr.mxu0 %v449
        %622 = vmatpush1.msra.mxu0 %v448
        %623 = vmatprep.subr.mxu0 %v451
        %624 = vmatpush1.msra.mxu0 %v450
        %625 = vmatprep.subr.mxu0 %v453
        %626 = vmatpush1.msra.mxu0 %v452
        %627 = vmatprep.subr.mxu0 %v455
        %628 = vmatpush1.msra.mxu0 %v454
        %629 = vmatprep.subr.mxu0 %v457
        %630 = vmatpush1.msra.mxu0 %v456
        %631 = vmatprep.subr.mxu0 %v459
        %632 = vmatpush1.msra.mxu0 %v458
        %633 = vmatprep.subr.mxu0 %v461
        %634 = vmatpush1.msra.mxu0 %v460
        %635 = vmatprep.subr.mxu0 %v463
        %636 = vmatpush1.msra.mxu0 %v462
        %637 = vmatprep.subr.mxu0 %v465
        %638 = vmatpush1.msra.mxu0 %v464
        %639 = vmatprep.subr.mxu0 %v467
        %640 = vmatpush1.msra.mxu0 %v466
        %641 = vmatprep.subr.mxu0 %v469
        %642 = vmatpush1.msra.mxu0 %v468
        %643 = vmatprep.subr.mxu0 %v471
        %644 = vmatpush1.msra.mxu0 %v470
        %645 = vmatprep.subr.mxu0 %v473
        %646 = vmatpush1.msra.mxu0 %v472
        %647 = vmatprep.subr.mxu0 %v475
        %648 = vmatpush1.msra.mxu0 %v474
        %649 = vmatprep.subr.mxu0 %v477
        %650 = vmatpush1.msra.mxu0 %v476
        %651 = vmatprep.subr.mxu0 %v479
        %652 = vmatpush1.msra.mxu0 %v478
        %653 = vmatprep.subr.mxu0 %v481
        %654 = vmatpush1.msra.mxu0 %v480
        %655 = vmatprep.subr.mxu0 %v483
        %656 = vmatpush1.msra.mxu0 %v482
        %657 = vmatprep.subr.mxu0 %v485
        %658 = vmatpush1.msra.mxu0 %v484
        %659 = vmatprep.subr.mxu0 %v487
        %660 = vmatpush1.msra.mxu0 %v486
        %661 = vmatprep.subr.mxu0 %v489
        %662 = vmatpush1.msra.mxu0 %v488
        %663 = vmatprep.subr.mxu0 %v491
        %664 = vmatpush1.msra.mxu0 %v490
        %665 = vmatprep.subr.mxu0 %v493
        %666 = vmatpush1.msra.mxu0 %v492
        %667 = vmatprep.subr.mxu0 %v495
        %668 = vmatpush1.msra.mxu0 %v494
        %669 = vmatprep.subr.mxu0 %v497
        %670 = vmatpush1.msra.mxu0 %v496
        %671 = vmatprep.mubr.f32.mxu0 %v426
        %672 = vmatmul.mubr.f32.gmra.mrb[0].mxu0 %v425
        %v673 = vpop.f32.mrb[0].mxu0
        %v674 = vadd.f32 %v597, %v673
        %v675 = vpop.f32.mrb[0].mxu0
        %v676 = vadd.f32 %v599, %v675
        %677 = vmatprep.mubr.f32.mxu0 %v428
        %678 = vmatmul.mubr.f32.gmra.mrb[0].mxu0 %v427
        %v679 = vpop.f32.mrb[0].mxu0
        %v680 = vadd.f32 %v603, %v679
        %v681 = vpop.f32.mrb[0].mxu0
        %v682 = vadd.f32 %v605, %v681
        %683 = vdwg.mxu0
        %v685 = vlaneseq
        %v686 = vshrl.u32 %v685, 7
        %v687 = vsub.s32 0, %v686
        %v688 = vrot.slane %v431, %v687
        %v689 = vlaneseq
        %v690 = vshrl.u32 %v689, 7
        %v691 = vsub.s32 1, %v690
        %v692 = vrot.slane %v431, %v691
        %v695 = vadd.f32 %v674, %v688
        %v696 = vadd.f32 %v676, %v692
        %v697 = vadd.f32 %v680, %v688
        %v698 = vadd.f32 %v682, %v692
        %v699 = vld [vmem:[#allocation10] sm:$0xff]
        %v700 = vld [vmem:[#allocation10 + $0x8] sm:$0xff]
        %v701 = vld [vmem:[#allocation10 + $0x10] sm:$0xff]
        %v702 = vld [vmem:[#allocation10 + $0x18] sm:$0xff]
        %v703 = vld [vmem:[#allocation10 + $0x20] sm:$0xff]
        %v704 = vld [vmem:[#allocation10 + $0x28] sm:$0xff]
        %v705 = vld [vmem:[#allocation10 + $0x30] sm:$0xff]
        %v706 = vld [vmem:[#allocation10 + $0x38] sm:$0xff]
        %v707 = vld [vmem:[#allocation10 + $0x40] sm:$0xff]
        %v708 = vld [vmem:[#allocation10 + $0x48] sm:$0xff]
        %v709 = vld [vmem:[#allocation10 + $0x50] sm:$0xff]
        %v710 = vld [vmem:[#allocation10 + $0x58] sm:$0xff]
        %v711 = vld [vmem:[#allocation10 + $0x60] sm:$0xff]
        %v712 = vld [vmem:[#allocation10 + $0x68] sm:$0xff]
        %v713 = vld [vmem:[#allocation10 + $0x70] sm:$0xff]
        %v714 = vld [vmem:[#allocation10 + $0x78] sm:$0xff]
        %v715 = vld [vmem:[#allocation10 + $0x80] sm:$0xff]
        %v716 = vld [vmem:[#allocation10 + $0x88] sm:$0xff]
        %v717 = vld [vmem:[#allocation10 + $0x90] sm:$0xff]
        %v718 = vld [vmem:[#allocation10 + $0x98] sm:$0xff]
        %v719 = vld [vmem:[#allocation10 + $0xa0] sm:$0xff]
        %v720 = vld [vmem:[#allocation10 + $0xa8] sm:$0xff]
        %v721 = vld [vmem:[#allocation10 + $0xb0] sm:$0xff]
        %v722 = vld [vmem:[#allocation10 + $0xb8] sm:$0xff]
        %v723 = vld [vmem:[#allocation10 + $0xc0] sm:$0xff]
        %v724 = vld [vmem:[#allocation10 + $0xc8] sm:$0xff]
        %v725 = vld [vmem:[#allocation10 + $0xd0] sm:$0xff]
        %v726 = vld [vmem:[#allocation10 + $0xd8] sm:$0xff]
        %v727 = vld [vmem:[#allocation10 + $0xe0] sm:$0xff]
        %v728 = vld [vmem:[#allocation10 + $0xe8] sm:$0xff]
        %v729 = vld [vmem:[#allocation10 + $0xf0] sm:$0xff]
        %v730 = vld [vmem:[#allocation10 + $0xf8] sm:$0xff]
        %v732 = vlaneseq
        %v733 = vshrl.u32 %v732, 7
        %v734 = vsub.s32 0, %v733
        %v735 = vrot.slane %v432, %v734
        %737 = vmatprep.subr.mxu0 0.0
        %738 = vmatpush1.msra.mxu0 %v699
        %739 = vmatprep.subr.mxu0 0.0
        %740 = vmatpush1.msra.mxu0 %v700
        %741 = vmatprep.subr.mxu0 0.0
        %742 = vmatpush1.msra.mxu0 %v701
        %743 = vmatprep.subr.mxu0 0.0
        %744 = vmatpush1.msra.mxu0 %v702
        %745 = vmatprep.subr.mxu0 0.0
        %746 = vmatpush1.msra.mxu0 %v703
        %747 = vmatprep.subr.mxu0 0.0
        %748 = vmatpush1.msra.mxu0 %v704
        %749 = vmatprep.subr.mxu0 0.0
        %750 = vmatpush1.msra.mxu0 %v705
        %751 = vmatprep.subr.mxu0 0.0
        %752 = vmatpush1.msra.mxu0 %v706
        %753 = vmatprep.subr.mxu0 0.0
        %754 = vmatpush1.msra.mxu0 %v707
        %755 = vmatprep.subr.mxu0 0.0
        %756 = vmatpush1.msra.mxu0 %v708
        %757 = vmatprep.subr.mxu0 0.0
        %758 = vmatpush1.msra.mxu0 %v709
        %759 = vmatprep.subr.mxu0 0.0
        %760 = vmatpush1.msra.mxu0 %v710
        %761 = vmatprep.subr.mxu0 0.0
        %762 = vmatpush1.msra.mxu0 %v711
        %763 = vmatprep.subr.mxu0 0.0
        %764 = vmatpush1.msra.mxu0 %v712
        %765 = vmatprep.subr.mxu0 0.0
        %766 = vmatpush1.msra.mxu0 %v713
        %767 = vmatprep.subr.mxu0 0.0
        %768 = vmatpush1.msra.mxu0 %v714
        %769 = vmatprep.subr.mxu0 0.0
        %770 = vmatpush1.msra.mxu0 %v715
        %771 = vmatprep.subr.mxu0 0.0
        %772 = vmatpush1.msra.mxu0 %v716
        %773 = vmatprep.subr.mxu0 0.0
        %774 = vmatpush1.msra.mxu0 %v717
        %775 = vmatprep.subr.mxu0 0.0
        %776 = vmatpush1.msra.mxu0 %v718
        %777 = vmatprep.subr.mxu0 0.0
        %778 = vmatpush1.msra.mxu0 %v719
        %779 = vmatprep.subr.mxu0 0.0
        %780 = vmatpush1.msra.mxu0 %v720
        %781 = vmatprep.subr.mxu0 0.0
        %782 = vmatpush1.msra.mxu0 %v721
        %783 = vmatprep.subr.mxu0 0.0
        %784 = vmatpush1.msra.mxu0 %v722
        %785 = vmatprep.subr.mxu0 0.0
        %786 = vmatpush1.msra.mxu0 %v723
        %787 = vmatprep.subr.mxu0 0.0
        %788 = vmatpush1.msra.mxu0 %v724
        %789 = vmatprep.subr.mxu0 0.0
        %790 = vmatpush1.msra.mxu0 %v725
        %791 = vmatprep.subr.mxu0 0.0
        %792 = vmatpush1.msra.mxu0 %v726
        %793 = vmatprep.subr.mxu0 0.0
        %794 = vmatpush1.msra.mxu0 %v727
        %795 = vmatprep.subr.mxu0 0.0
        %796 = vmatpush1.msra.mxu0 %v728
        %797 = vmatprep.subr.mxu0 0.0
        %798 = vmatpush1.msra.mxu0 %v729
        %799 = vmatprep.subr.mxu0 0.0
        %800 = vmatpush1.msra.mxu0 %v730
        %801 = vmatprep.mubr.f32.mxu0 %v426
        %802 = vmatmul.mubr.f32.gmra.mrb[0].mxu0 %v425
        %v803 = vpop.f32.mrb[0].mxu0
        %v804 = vadd.f32 %v735, %v803
        %v805 = vpop.f32.mrb[0].mxu0
        %806 = vmatprep.mubr.f32.mxu0 %v428
        %807 = vmatmul.mubr.f32.gmra.mrb[0].mxu0 %v427
        %v808 = vpop.f32.mrb[0].mxu0
        %v809 = vadd.f32 %v735, %v808
        %v810 = vpop.f32.mrb[0].mxu0
        %811 = vdwg.mxu0
        %v812 = vld [vmem:[#allocation11] sm:$0xff]
        %v813 = vld [vmem:[#allocation11 + $0x8] sm:$0xff]
        %v814 = vld [vmem:[#allocation11 + $0x10] sm:$0xff]
        %v815 = vld [vmem:[#allocation11 + $0x18] sm:$0xff]
        %v816 = vld [vmem:[#allocation11 + $0x20] sm:$0xff]
        %v817 = vld [vmem:[#allocation11 + $0x28] sm:$0xff]
        %v818 = vld [vmem:[#allocation11 + $0x30] sm:$0xff]
        %v819 = vld [vmem:[#allocation11 + $0x38] sm:$0xff]
        %v820 = vld [vmem:[#allocation11 + $0x40] sm:$0xff]
        %v821 = vld [vmem:[#allocation11 + $0x48] sm:$0xff]
        %v822 = vld [vmem:[#allocation11 + $0x50] sm:$0xff]
        %v823 = vld [vmem:[#allocation11 + $0x58] sm:$0xff]
        %v824 = vld [vmem:[#allocation11 + $0x60] sm:$0xff]
        %v825 = vld [vmem:[#allocation11 + $0x68] sm:$0xff]
        %v826 = vld [vmem:[#allocation11 + $0x70] sm:$0xff]
        %v827 = vld [vmem:[#allocation11 + $0x78] sm:$0xff]
        %v829 = vlaneseq
        %v830 = vshrl.u32 %v829, 7
        %v831 = vsub.s32 0, %v830
        %v832 = vrot.slane %v433, %v831
        %834 = vmatprep.subr.mxu0 0.0
        %835 = vmatpush1.msra.mxu0 %v812
        %836 = vmatprep.subr.mxu0 0.0
        %837 = vmatpush1.msra.mxu0 %v813
        %838 = vmatprep.subr.mxu0 0.0
        %839 = vmatpush1.msra.mxu0 %v814
        %840 = vmatprep.subr.mxu0 0.0
        %841 = vmatpush1.msra.mxu0 %v815
        %842 = vmatprep.subr.mxu0 0.0
        %843 = vmatpush1.msra.mxu0 %v816
        %844 = vmatprep.subr.mxu0 0.0
        %845 = vmatpush1.msra.mxu0 %v817
        %846 = vmatprep.subr.mxu0 0.0
        %847 = vmatpush1.msra.mxu0 %v818
        %848 = vmatprep.subr.mxu0 0.0
        %849 = vmatpush1.msra.mxu0 %v819
        %850 = vmatprep.subr.mxu0 0.0
        %851 = vmatpush1.msra.mxu0 %v820
        %852 = vmatprep.subr.mxu0 0.0
        %853 = vmatpush1.msra.mxu0 %v821
        %854 = vmatprep.subr.mxu0 0.0
        %855 = vmatpush1.msra.mxu0 %v822
        %856 = vmatprep.subr.mxu0 0.0
        %857 = vmatpush1.msra.mxu0 %v823
        %858 = vmatprep.subr.mxu0 0.0
        %859 = vmatpush1.msra.mxu0 %v824
        %860 = vmatprep.subr.mxu0 0.0
        %861 = vmatpush1.msra.mxu0 %v825
        %862 = vmatprep.subr.mxu0 0.0
        %863 = vmatpush1.msra.mxu0 %v826
        %864 = vmatprep.subr.mxu0 0.0
        %865 = vmatpush1.msra.mxu0 %v827
        %866 = vmatprep.subr.mxu0 0.0
        %867 = vmatpush1.msra.mxu0 0.0
        %868 = vmatprep.subr.mxu0 0.0
        %869 = vmatpush1.msra.mxu0 0.0
        %870 = vmatprep.subr.mxu0 0.0
        %871 = vmatpush1.msra.mxu0 0.0
        %872 = vmatprep.subr.mxu0 0.0
        %873 = vmatpush1.msra.mxu0 0.0
        %874 = vmatprep.subr.mxu0 0.0
        %875 = vmatpush1.msra.mxu0 0.0
        %876 = vmatprep.subr.mxu0 0.0
        %877 = vmatpush1.msra.mxu0 0.0
        %878 = vmatprep.subr.mxu0 0.0
        %879 = vmatpush1.msra.mxu0 0.0
        %880 = vmatprep.subr.mxu0 0.0
        %881 = vmatpush1.msra.mxu0 0.0
        %882 = vmatprep.subr.mxu0 0.0
        %883 = vmatpush1.msra.mxu0 0.0
        %884 = vmatprep.subr.mxu0 0.0
        %885 = vmatpush1.msra.mxu0 0.0
        %886 = vmatprep.subr.mxu0 0.0
        %887 = vmatpush1.msra.mxu0 0.0
        %888 = vmatprep.subr.mxu0 0.0
        %889 = vmatpush1.msra.mxu0 0.0
        %890 = vmatprep.subr.mxu0 0.0
        %891 = vmatpush1.msra.mxu0 0.0
        %892 = vmatprep.subr.mxu0 0.0
        %893 = vmatpush1.msra.mxu0 0.0
        %894 = vmatprep.subr.mxu0 0.0
        %895 = vmatpush1.msra.mxu0 0.0
        %896 = vmatprep.subr.mxu0 0.0
        %897 = vmatpush1.msra.mxu0 0.0
        %898 = vmatprep.mubr.f32.mxu0 0.0
        %899 = vmatmul.mubr.f32.gmra.mrb[0].mxu0 %v429
        %v900 = vpop.f32.mrb[0].mxu0
        %v901 = vadd.f32 %v832, %v900
        %v902 = vpop.f32.mrb[0].mxu0
        %903 = vmatprep.mubr.f32.mxu0 0.0
        %904 = vmatmul.mubr.f32.gmra.mrb[0].mxu0 %v430
        %v905 = vpop.f32.mrb[0].mxu0
        %v906 = vadd.f32 %v832, %v905
        %v907 = vpop.f32.mrb[0].mxu0
        %908 = vdwg.mxu0
        %v909 = vmul.f32 %v695, 0.5
        %v910 = vmul.f32 %v696, 0.5
        %v911 = vmul.f32 %v697, 0.5
        %v912 = vmul.f32 %v698, 0.5
        %v913 = vtanh.pop %v909
        %v914 = vtanh.pop %v910
        %v915 = vtanh.pop %v911
        %v916 = vtanh.pop %v912
        %v917 = vadd.f32 %v913, 1.0
        %v918 = vadd.f32 %v914, 1.0
        %v919 = vadd.f32 %v915, 1.0
        %v920 = vadd.f32 %v916, 1.0
        %v921 = vmul.f32 %v917, 0.5
        %v922 = vmul.f32 %v918, 0.5
        %v923 = vmul.f32 %v919, 0.5
        %v924 = vmul.f32 %v920, 0.5
        %v925 = vmul.f32 %v921, %v901
        %v926 = vmul.f32 %v923, %v906
        %v927 = vadd.f32 %v804, %v925
        %v928 = vadd.f32 %v809, %v926
        %v929 = vtanh.pop %v927
        %v930 = vtanh.pop %v928
        %v931 = vsub.f32 %v429, %v929
        %v932 = vsub.f32 %v430, %v930
        %v933 = vmul.f32 %v922, %v931
        %v934 = vmul.f32 %v924, %v932
        %v935 = vadd.f32 %v929, %v933
        %v936 = vadd.f32 %v930, %v934
        %937 = vst [vmem:[%s408] sm:$0xff] %v935
        %938 = vst [vmem:[%s408 + $0x8] sm:$0xff] %v936
        %s939 = sand.u32 %s194, 1
        %s940 = scalar_lea.sflag [#allocation4], %s939
        %s941 = sand.u32 %s194, 1
        %s942 = smul.addr %s941, 16
        %s943 = scalar_lea.vmem [#allocation13], %s942
        // Predicated region
        $region73: #{tpu_custom_call.1} parent=47 // pred_check
          %p944 = pneg %p204
        $region74: #{tpu_custom_call.1} parent=47 // pred_check_branch
          %946 = sbr.rel (%p944) target = $region76
        $region75: #{tpu_custom_call.1} parent=47 // pred_region
          %s947 = smul.u32 2, %s29
          %s948 = ssub.s32 3, %s947
          %p949 = scmp.lt.s32.totalorder %s948, 2
          %s950 = scalar_select %p949, %s948, 2
          %s951 = smul.u32 128, %s950
          %s953 = ssub.s32 256, %s951
          %954 = vsyncadd %s940, %s953
          %p955 = scmp.ne.s32.totalorder 0, %s951
          %s956 = smul.addr %s947, 128
          %s957 = scalar_lea.hbm %s7, %s956
          %s958 = smul.u32 8, %s950
          %s959 = sshll.u32 %s943, 4
          %s960 = int_to_ptr.vmem [resolvable:$true] %s959
          %s961 = sshll.u32 %s958, 4
          %965 = dma.vmem_to_hbm [thread:$0]  (%p955), %s960, %s961, %s957, %s940, 128, 128, 8
        $region76: #{tpu_custom_call.1} parent=47 // pred_fallthru
          _
      $region48: #{tpu_custom_call.1} parent=5 // pred_fallthru
        _
      %p966 = scmp.le.s32.totalorder 2, %s24
      // Predicated region
      $region77: #{tpu_custom_call.1} parent=5 // pred_check
        %p967 = pneg %p966
      $region78: #{tpu_custom_call.1} parent=5 // pred_check_branch
        %969 = sbr.rel (%p967) target = $region80
      $region79: #{tpu_custom_call.1} parent=5 // pred_region
        %s970 = ssub.s32 %s24, 2
        // Predicated region
        $region81: #{tpu_custom_call.1} parent=79 // pred_check
          %p971 = pneg %p210
        $region82: #{tpu_custom_call.1} parent=79 // pred_check_branch
          %973 = sbr.rel (%p971) target = $region84
        $region83: #{tpu_custom_call.1} parent=79 // pred_region
          %s974 = sand.u32 %s195, 1
          %s975 = scalar_lea.sflag [#allocation4], %s974
          %s976 = sand.u32 %s195, 1
          %s977 = smul.addr %s976, 16
          %s978 = scalar_lea.vmem [#allocation13], %s977
          %979 = dma.done %s975, 256
        $region84: #{tpu_custom_call.1} parent=79 // pred_fallthru
          _
      $region80: #{tpu_custom_call.1} parent=5 // pred_fallthru
        _
    $region6: #{tpu_custom_call.1} parent=1 // loop_footer
      %s28 = sadd.s32 1, %s24
    $region7: #{tpu_custom_call.1} parent=1 // loop_footer_branch
      %23 = sbr.rel target = $region3
    $region8: #{tpu_custom_call.1} parent=1 // loop_exit
      _
    %980 = vsyncpa [#allocation3], 1
    %s981 = scalar_lea.sflag [#allocation3], 1
    %982 = vsyncpa %s981, 1
    %983 = vsyncpa [#allocation6], 1
    %s984 = scalar_lea.sflag [#allocation6], 1
    %985 = vsyncpa %s984, 1
    %986 = vsyncpa [#allocation9], 1
    %987 = vsyncpa [#allocation12], 1
    %988 = vsyncpa [#allocation4], 1
    %s989 = scalar_lea.sflag [#allocation4], 1
    %990 = vsyncpa %s989, 1

</llo_original>
